<compile_context>
chip_gen: v6e
topology: v6e:2x2x1
jax: 0.10.0
libtpu: 0.0.40
codegen_flags: <defaults>
</compile_context>

<pallas_src>
import functools
import math

import jax
import jax.numpy as jnp
from jax.experimental import pallas as pl
from jax.experimental.pallas import tpu as pltpu


# ---------------------------------------------------------------------------
# helpers
# ---------------------------------------------------------------------------
def _nbytes(shape, dtype):
    return math.prod(shape) * jnp.dtype(dtype).itemsize


def _vmem_limit(raw_bytes):
    # Generous padding for (8,128) tile padding + double buffering; clamped to a
    # budget that is safe on v5e/v6e (128 MiB physical VMEM) and v7x (64 MiB).
    return int(min(max(8 * raw_bytes + (4 << 20), 16 << 20), 32 << 20))


def _pick_tile_v(vocab_size):
    """Largest vocab tile that is a multiple of 128, divides V and is <= 512."""
    if vocab_size % 128 != 0:
        return vocab_size          # small / ragged vocab: single full-width tile
    tile = 128
    while tile * 2 <= 512 and vocab_size % (tile * 2) == 0:
        tile *= 2
    return tile


# ---------------------------------------------------------------------------
# Per-sequence kernel: decode-step-invariant encoder projections
#   enc_p = enc_dim_changer(relu(enc_output));  e = enc_wts(relu(enc_p))
# ---------------------------------------------------------------------------
def encoder_proj_kernel(enc_ref, wedc_ref, bedc_ref, wenc_ref, benc_ref,
                        encp_ref, e_ref):
    f32 = jnp.float32
    a = jnp.maximum(enc_ref[...], 0.0)                                 # (B*S, 2H)
    enc_p = jnp.dot(a, wedc_ref[...], preferred_element_type=f32) + bedc_ref[...]
    encp_ref[...] = enc_p                                              # (B*S, H)
    e_ref[...] = (jnp.dot(jnp.maximum(enc_p, 0.0), wenc_ref[...],
                          preferred_element_type=f32) + benc_ref[...])


def encode_projections(enc_output, attn_params):
    """Run once per sequence; reuse enc_p / e for every decode step."""
    B, S, H2 = enc_output.shape
    H = H2 // 2
    enc2d = enc_output.reshape(B * S, H2)      # flatten to 2-D MXU matmuls
    ins = [enc2d, attn_params['w_edc'], attn_params['b_edc'],
           attn_params['w_enc'], attn_params['b_enc']]
    out_shape = (jax.ShapeDtypeStruct((B * S, H), jnp.float32),
                 jax.ShapeDtypeStruct((B * S, H), jnp.float32))
    raw = sum(_nbytes(a.shape, a.dtype) for a in ins)
    raw += sum(_nbytes(o.shape, o.dtype) for o in out_shape)

    def full(shape):
        nd = len(shape)
        return pl.BlockSpec(shape, lambda i, _nd=nd: (0,) * _nd)

    enc_p, e = pl.pallas_call(
        encoder_proj_kernel,
        grid=(1,),
        in_specs=[full(a.shape) for a in ins],
        out_specs=(full((B * S, H)), full((B * S, H))),
        out_shape=out_shape,
        compiler_params=pltpu.CompilerParams(
            dimension_semantics=("arbitrary",),
            vmem_limit_bytes=_vmem_limit(raw)),
    )(*ins)
    return enc_p.reshape(B, S, H), e.reshape(B, S, H)


# ---------------------------------------------------------------------------
# Fused per-token decode-step kernel:
#   embedding gather + attention (step part) + GRU stack + tiled vocab FC
# ---------------------------------------------------------------------------
def decoder_step_kernel(tok_ref, emb_hbm, hidden_ref, encp_ref, e_ref, mask_ref,
                        wd1_ref, bd1_ref, wd2_ref, bd2_ref, ws_ref, bs_ref,
                        *rest, num_layers, hidden_size, batch):
    L, H, B = num_layers, hidden_size, batch
    f32 = jnp.float32
    n_gru = 5 + 4 * (L - 1)
    gru_refs = rest[:n_gru]
    wfc_ref, bfc_ref = rest[n_gru], rest[n_gru + 1]
    logits_ref, hn_ref, score_ref = rest[n_gru + 2:n_gru + 5]
    emb_vmem, x_vmem, sem = rest[n_gru + 5:n_gru + 8]

    t = pl.program_id(0)

    @pl.when(t == 0)
    def _attention_and_gru():
        # -- embedding lookup: token ids live in SMEM (scalar prefetch); gather
        #    B rows out of the HBM-resident table with manual DMAs.
        copies = [pltpu.make_async_copy(emb_hbm.at[pl.ds(tok_ref[b], 1)],
                                        emb_vmem.at[pl.ds(b, 1)],
                                        sem.at[b])
                  for b in range(B)]
        for cp in copies:
            cp.start()
        for cp in copies:
            cp.wait()

        # -- attention (per-step part; enc_p / e precomputed per sequence).
        dec = jnp.maximum(hidden_ref[L - 1], 0.0)                      # (B, H)
        d1 = jnp.maximum(
            jnp.dot(dec, wd1_ref[...], preferred_element_type=f32) + bd1_ref[...],
            0.0)
        d2 = jnp.dot(d1, wd2_ref[...], preferred_element_type=f32) + bd2_ref[...]

        s = jnp.tanh(e_ref[...] + d2[:, None, :])                      # (B, S, H)
        # score_wts: Linear(H -> 1) expressed lane-dense as a weighted reduce.
        sc = jnp.sum(s * ws_ref[...], axis=-1) + bs_ref[...]           # (B, S)
        # masked softmax over the sequence axis (finite fill avoids NaN on a
        # fully-masked row; identical to -inf fill whenever a valid token exists).
        sc = jnp.where(mask_ref[...] == 0.0, -1e30, sc)
        m = jnp.max(sc, axis=1, keepdims=True)
        p = jnp.exp(sc - m)
        attn = p / jnp.sum(p, axis=1, keepdims=True)                   # (B, S)
        score_ref[...] = attn
        ctx = jnp.sum(encp_ref[...] * attn[..., None], axis=1)         # (B, H)

        # -- GRU stack (seq_len == 1).  Per-gate weights keep every matmul
        #    output lane-aligned; the layer-0 input concat [emb ; ctx] is folded
        #    into two matmuls per gate.
        emb = emb_vmem[...]
        wih_e, wih_c, whh, bih, bhh = gru_refs[0:5]
        h = hidden_ref[0]
        gi = [jnp.dot(emb, wih_e[g], preferred_element_type=f32)
              + jnp.dot(ctx, wih_c[g], preferred_element_type=f32)
              + bih[g] for g in range(3)]
        gh = [jnp.dot(h, whh[g], preferred_element_type=f32) + bhh[g]
              for g in range(3)]
        r = jax.nn.sigmoid(gi[0] + gh[0])
        z = jax.nn.sigmoid(gi[1] + gh[1])
        n = jnp.tanh(gi[2] + r * gh[2])
        x = (1.0 - z) * n + z * h
        hn_ref[0] = x

        for layer in range(1, L):
            wih, whh, bih, bhh = gru_refs[5 + 4 * (layer - 1): 5 + 4 * layer]
            h = hidden_ref[layer]
            gi = [jnp.dot(x, wih[g], preferred_element_type=f32) + bih[g]
                  for g in range(3)]
            gh = [jnp.dot(h, whh[g], preferred_element_type=f32) + bhh[g]
                  for g in range(3)]
            r = jax.nn.sigmoid(gi[0] + gh[0])
            z = jax.nn.sigmoid(gi[1] + gh[1])
            n = jnp.tanh(gi[2] + r * gh[2])
            x = (1.0 - z) * n + z * h
            hn_ref[layer] = x
        # TODO(synk): GRU inter-layer dropout and dropout_layer are eval-mode no-ops.

        x_vmem[...] = jnp.maximum(x, 0.0)    # relu(gru out), reused by every vocab tile

    # -- vocab projection: one lane-dense (B, TILE_V) tile per grid step so the
    #    (H, V) weight is streamed through VMEM (pipelined DMA overlaps the MXU).
    logits_ref[...] = (jnp.dot(x_vmem[...], wfc_ref[...],
                               preferred_element_type=f32) + bfc_ref[...])


def decode_step(x_tok, hidden, enc_p, e, mask, params):
    """Fused per-token decoder step: embedding + attention + GRU + vocab FC."""
    L, B, H = hidden.shape
    S = mask.shape[1]
    V = params['fc']['w'].shape[1]
    TILE_V = _pick_tile_v(V)
    NV = V // TILE_V
    ap = params['attn']

    tok = x_tok[:, 0].astype(jnp.int32)                                # (B,)

    ins = [params['emb'], hidden, enc_p, e, mask,
           ap['w_d1'], ap['b_d1'], ap['w_d2'], ap['b_d2'], ap['w_s'], ap['b_s']]
    g0 = params['gru'][0]
    ins += [g0['wih_e'], g0['wih_c'], g0['whh'], g0['bih'], g0['bhh']]
    for layer in range(1, L):
        g = params['gru'][layer]
        ins += [g['wih'], g['whh'], g['bih'], g['bhh']]
    ins += [params['fc']['w'], params['fc']['b']]

    def const_spec(shape):
        nd = len(shape)
        return pl.BlockSpec(shape, lambda t, tok_ref, _nd=nd: (0,) * _nd)

    in_specs = ([pl.BlockSpec(memory_space=pl.ANY)]                    # emb table stays in HBM
                + [const_spec(a.shape) for a in ins[1:-2]]
                + [pl.BlockSpec((H, TILE_V), lambda t, tok_ref: (0, t)),
                   pl.BlockSpec((1, TILE_V), lambda t, tok_ref: (0, t))])
    out_specs = [pl.BlockSpec((B, TILE_V), lambda t, tok_ref: (0, t)),
                 const_spec((L, B, H)),
                 const_spec((B, S))]
    out_shape = (jax.ShapeDtypeStruct((B, V), jnp.float32),
                 jax.ShapeDtypeStruct((L, B, H), jnp.float32),
                 jax.ShapeDtypeStruct((B, S), jnp.float32))

    # VMEM budget: everything except the HBM-resident embedding table, plus one
    # FC weight/bias/logits tile, the resident outputs and the scratch buffers.
    raw = sum(_nbytes(a.shape, a.dtype) for a in ins[1:-2])
    raw += _nbytes((H, TILE_V), jnp.float32) + _nbytes((1, TILE_V), jnp.float32)
    raw += _nbytes((B, TILE_V), jnp.float32)
    raw += _nbytes((L, B, H), jnp.float32) + _nbytes((B, S), jnp.float32)
    raw += 2 * _nbytes((B, H), jnp.float32)

    kernel = functools.partial(decoder_step_kernel,
                               num_layers=L, hidden_size=H, batch=B)
    logits, hn, score = pl.pallas_call(
        kernel,
        grid_spec=pltpu.PrefetchScalarGridSpec(
            num_scalar_prefetch=1,
            grid=(NV,),
            in_specs=in_specs,
            out_specs=out_specs,
            scratch_shapes=[pltpu.VMEM((B, H), jnp.float32),   # gathered embeddings
                            pltpu.VMEM((B, H), jnp.float32),   # relu(gru output)
                            pltpu.SemaphoreType.DMA((B,))]),
        out_shape=out_shape,
        compiler_params=pltpu.CompilerParams(
            # The vocab axis must stay "arbitrary": the attention/GRU state is
            # computed at tile 0 and carried in VMEM scratch across vocab tiles.
            dimension_semantics=("arbitrary",),
            vmem_limit_bytes=_vmem_limit(raw)),
    )(tok, *ins)
    return logits, hn, score


# ---------------------------------------------------------------------------
# Decoder forward (same semantics / output shapes as the PyTorch module)
# ---------------------------------------------------------------------------
def decoder_forward(x_tok, hidden, enc_output, mask, params):
    """Full Decoder.forward.  In an autoregressive loop call
    encode_projections() once per sequence and decode_step() once per token."""
    enc_p, e = encode_projections(enc_output, params['attn'])
    logits, hn, score = decode_step(x_tok, hidden, enc_p, e, mask, params)
    # PyTorch output shapes: (B, 1, V), (L, B, H), (B, S, 1)
    return logits[:, None, :], hn, score[..., None]


# ---------------------------------------------------------------------------
# Deterministic parameter construction
# ---------------------------------------------------------------------------
def make_params(key, vocab_size, hidden_size, num_layers, pad_token_id):
    H, V, L = hidden_size, vocab_size, num_layers

    def nxt():
        nonlocal key
        key, sub = jax.random.split(key)
        return sub

    def w(shape, scale=0.1):
        return scale * jax.random.normal(nxt(), shape, dtype=jnp.float32)

    emb = w((V, H))
    emb = emb.at[pad_token_id].set(0.0)                  # padding_idx row

    attn = {
        'w_edc': w((2 * H, H)), 'b_edc': w((1, H)),      # enc_dim_changer
        'w_enc': w((H, H)),     'b_enc': w((1, H)),      # enc_wts
        'w_d1':  w((H, H)),     'b_d1':  w((1, H)),      # dec_wts[0]
        'w_d2':  w((H, H)),     'b_d2':  w((1, H)),      # dec_wts[2]
        'w_s':   w((1, H)),     'b_s':   w((1, 1)),      # score_wts (row layout)
    }

    # GRU weights stored per gate [r, z, n] along a leading axis; layer 0 input
    # weights additionally split into the embedding part and the attention-
    # context part (equivalent to a (3H, 2H) weight_ih_l0 with cat order [emb;ctx]).
    gru = [{
        'wih_e': w((3, H, H)), 'wih_c': w((3, H, H)),
        'whh':   w((3, H, H)),
        'bih':   w((3, 1, H)), 'bhh': w((3, 1, H)),
    }]
    for _ in range(1, L):
        gru.append({
            'wih': w((3, H, H)), 'whh': w((3, H, H)),
            'bih': w((3, 1, H)), 'bhh': w((3, 1, H)),
        })

    fc = {'w': w((H, V)), 'b': w((1, V))}
    return {'emb': emb, 'attn': attn, 'gru': gru, 'fc': fc}


# ---------------------------------------------------------------------------
# Pure-JAX reference (same math, same parameter layout)
# ---------------------------------------------------------------------------
def reference_forward(x_tok, hidden, enc_output, mask, params):
    ap = params['attn']
    emb = params['emb'][x_tok[:, 0]]
    a = jnp.maximum(enc_output, 0.0)
    enc_p = a @ ap['w_edc'] + ap['b_edc']
    e = jnp.maximum(enc_p, 0.0) @ ap['w_enc'] + ap['b_enc']
    d = jnp.maximum(hidden[-1], 0.0)
    d1 = jnp.maximum(d @ ap['w_d1'] + ap['b_d1'], 0.0)
    d2 = d1 @ ap['w_d2'] + ap['b_d2']
    s = jnp.tanh(e + d2[:, None, :])
    sc = jnp.sum(s * ap['w_s'], axis=-1) + ap['b_s']
    sc = jnp.where(mask == 0.0, -1e30, sc)
    attn = jax.nn.softmax(sc, axis=1)
    ctx = jnp.sum(enc_p * attn[..., None], axis=1)

    hs = []
    g0 = params['gru'][0]
    h = hidden[0]
    gi = [emb @ g0['wih_e'][g] + ctx @ g0['wih_c'][g] + g0['bih'][g] for g in range(3)]
    gh = [h @ g0['whh'][g] + g0['bhh'][g] for g in range(3)]
    r = jax.nn.sigmoid(gi[0] + gh[0]); z = jax.nn.sigmoid(gi[1] + gh[1])
    n = jnp.tanh(gi[2] + r * gh[2])
    x = (1.0 - z) * n + z * h
    hs.append(x)
    for layer in range(1, len(params['gru'])):
        g = params['gru'][layer]
        h = hidden[layer]
        gi = [x @ g['wih'][k] + g['bih'][k] for k in range(3)]
        gh = [h @ g['whh'][k] + g['bhh'][k] for k in range(3)]
        r = jax.nn.sigmoid(gi[0] + gh[0]); z = jax.nn.sigmoid(gi[1] + gh[1])
        n = jnp.tanh(gi[2] + r * gh[2])
        x = (1.0 - z) * n + z * h
        hs.append(x)
    logits = jnp.maximum(x, 0.0) @ params['fc']['w'] + params['fc']['b']
    return logits[:, None, :], jnp.stack(hs), attn[..., None]


# ---------------------------------------------------------------------------
if __name__ == "__main__":
    B, T, S = 2, 1, 8
    H, L, V = 32, 2, 64
    PAD = 0

    key = jax.random.PRNGKey(0)
    k_par, k_tok, k_hid, k_enc = jax.random.split(key, 4)

    params = make_params(k_par, vocab_size=V, hidden_size=H,
                         num_layers=L, pad_token_id=PAD)

    # Example inputs (eval-mode forward of Decoder).
    x_tok = jax.random.randint(k_tok, (B, T), 1, V, dtype=jnp.int32)       # (B, 1)
    hidden = jax.random.normal(k_hid, (L, B, H), dtype=jnp.float32)        # (L, B, H)
    enc_output = jax.random.normal(k_enc, (B, S, 2 * H), dtype=jnp.float32)
    lengths = jnp.array([S, S - 3], dtype=jnp.int32)
    mask = (jnp.arange(S)[None, :] < lengths[:, None]).astype(jnp.float32)  # (B, S)

    logits, hn, score = decoder_forward(x_tok, hidden, enc_output, mask, params)
    jax.block_until_ready((logits, hn, score))

    assert logits.shape == (B, T, V)
    assert hn.shape == (L, B, H)
    assert score.shape == (B, S, 1)

    # numerical sanity check against a pure-JAX reference (loose tolerance to
    # allow for MXU vs XLA f32 matmul precision differences).
    ref_logits, ref_hn, ref_score = reference_forward(x_tok, hidden, enc_output,
                                                      mask, params)
    assert jnp.allclose(logits, ref_logits, atol=2e-2, rtol=2e-2)
    assert jnp.allclose(hn, ref_hn, atol=2e-2, rtol=2e-2)
    assert jnp.allclose(score, ref_score, atol=2e-2, rtol=2e-2)

    print("KERNEL_OK")
</pallas_src>

<mosaic_0001>
module attributes {stable_mosaic.version = 11 : i64} {
  func.func @encoder_proj_kernel(%arg0: i32, %arg1: memref<16x64xf32, #tpu.memory_space<vmem>>, %arg2: memref<64x32xf32, #tpu.memory_space<vmem>>, %arg3: memref<1x32xf32, #tpu.memory_space<vmem>>, %arg4: memref<32x32xf32, #tpu.memory_space<vmem>>, %arg5: memref<1x32xf32, #tpu.memory_space<vmem>>, %arg6: memref<16x32xf32, #tpu.memory_space<vmem>>, %arg7: memref<16x32xf32, #tpu.memory_space<vmem>>) attributes {dimension_semantics = [#tpu.dimension_semantics<arbitrary>], iteration_bounds = array<i64: 1>, scalar_prefetch = 0 : i64, scratch_operands = 0 : i64, tpu.core_type = #tpu.core_type<tc>, window_params = [{pipeline_mode = #tpu.pipeline_mode<synchronous>, transform_indices = @transform_0, window_bounds = array<i64: 16, 64>}, {pipeline_mode = #tpu.pipeline_mode<synchronous>, transform_indices = @transform_1, window_bounds = array<i64: 64, 32>}, {pipeline_mode = #tpu.pipeline_mode<synchronous>, transform_indices = @transform_2, window_bounds = array<i64: 1, 32>}, {pipeline_mode = #tpu.pipeline_mode<synchronous>, transform_indices = @transform_3, window_bounds = array<i64: 32, 32>}, {pipeline_mode = #tpu.pipeline_mode<synchronous>, transform_indices = @transform_4, window_bounds = array<i64: 1, 32>}, {pipeline_mode = #tpu.pipeline_mode<synchronous>, transform_indices = @transform_5, window_bounds = array<i64: 16, 32>}, {pipeline_mode = #tpu.pipeline_mode<synchronous>, transform_indices = @transform_6, window_bounds = array<i64: 16, 32>}]} {
    %c0 = arith.constant 0 : index
    %c0_0 = arith.constant 0 : index
    %0 = vector.load %arg1[%c0, %c0_0] : memref<16x64xf32, #tpu.memory_space<vmem>>, vector<16x64xf32>
    %cst = arith.constant 0.000000e+00 : f32
    %1 = vector.broadcast %cst : f32 to vector<16x64xf32>
    %2 = arith.maximumf %0, %1 : vector<16x64xf32>
    %c0_1 = arith.constant 0 : index
    %c0_2 = arith.constant 0 : index
    %3 = vector.load %arg2[%c0_1, %c0_2] : memref<64x32xf32, #tpu.memory_space<vmem>>, vector<64x32xf32>
    %cst_3 = arith.constant dense<0.000000e+00> : vector<16x32xf32>
    %4 = tpu.matmul %2, %3, %cst_3 {dimension_numbers = #tpu.dot_dimension_numbers<[1], [0], [0], [1], [0, 0, 1, 1], [], []>} : vector<16x64xf32>, vector<64x32xf32>, vector<16x32xf32> -> vector<16x32xf32>
    %c0_4 = arith.constant 0 : index
    %c0_5 = arith.constant 0 : index
    %5 = vector.load %arg3[%c0_4, %c0_5] : memref<1x32xf32, #tpu.memory_space<vmem>>, vector<1x32xf32>
    %6 = vector.broadcast %5 : vector<1x32xf32> to vector<16x32xf32>
    %7 = arith.addf %4, %6 : vector<16x32xf32>
    %c0_6 = arith.constant 0 : index
    %c0_7 = arith.constant 0 : index
    %8 = vector.load %arg6[%c0_6, %c0_7] : memref<16x32xf32, #tpu.memory_space<vmem>>, vector<16x32xf32>
    tpu.vector_store %arg6[%c0_6, %c0_7], %7 {strides = array<i32>} : memref<16x32xf32, #tpu.memory_space<vmem>>, vector<16x32xf32>,
    %cst_8 = arith.constant 0.000000e+00 : f32
    %9 = vector.broadcast %cst_8 : f32 to vector<16x32xf32>
    %10 = arith.maximumf %7, %9 : vector<16x32xf32>
    %c0_9 = arith.constant 0 : index
    %c0_10 = arith.constant 0 : index
    %11 = vector.load %arg4[%c0_9, %c0_10] : memref<32x32xf32, #tpu.memory_space<vmem>>, vector<32x32xf32>
    %cst_11 = arith.constant dense<0.000000e+00> : vector<16x32xf32>
    %12 = tpu.matmul %10, %11, %cst_11 {dimension_numbers = #tpu.dot_dimension_numbers<[1], [0], [0], [1], [0, 0, 1, 1], [], []>} : vector<16x32xf32>, vector<32x32xf32>, vector<16x32xf32> -> vector<16x32xf32>
    %c0_12 = arith.constant 0 : index
    %c0_13 = arith.constant 0 : index
    %13 = vector.load %arg5[%c0_12, %c0_13] : memref<1x32xf32, #tpu.memory_space<vmem>>, vector<1x32xf32>
    %14 = vector.broadcast %13 : vector<1x32xf32> to vector<16x32xf32>
    %15 = arith.addf %12, %14 : vector<16x32xf32>
    %c0_14 = arith.constant 0 : index
    %c0_15 = arith.constant 0 : index
    %16 = vector.load %arg7[%c0_14, %c0_15] : memref<16x32xf32, #tpu.memory_space<vmem>>, vector<16x32xf32>
    tpu.vector_store %arg7[%c0_14, %c0_15], %15 {strides = array<i32>} : memref<16x32xf32, #tpu.memory_space<vmem>>, vector<16x32xf32>,
    return
  }
  func.func @transform_0(%arg0: i32) -> (i32, i32) {
    %c0_i32 = arith.constant 0 : i32
    %c0_i32_0 = arith.constant 0 : i32
    %c0_i32_1 = arith.constant 0 : i32
    return %c0_i32, %c0_i32_0 : i32, i32
  }
  func.func @transform_1(%arg0: i32) -> (i32, i32) {
    %c0_i32 = arith.constant 0 : i32
    %c0_i32_0 = arith.constant 0 : i32
    %c0_i32_1 = arith.constant 0 : i32
    return %c0_i32, %c0_i32_0 : i32, i32
  }
  func.func @transform_2(%arg0: i32) -> (i32, i32) {
    %c0_i32 = arith.constant 0 : i32
    %c0_i32_0 = arith.constant 0 : i32
    %c0_i32_1 = arith.constant 0 : i32
    return %c0_i32, %c0_i32_0 : i32, i32
  }
  func.func @transform_3(%arg0: i32) -> (i32, i32) {
    %c0_i32 = arith.constant 0 : i32
    %c0_i32_0 = arith.constant 0 : i32
    %c0_i32_1 = arith.constant 0 : i32
    return %c0_i32, %c0_i32_0 : i32, i32
  }
  func.func @transform_4(%arg0: i32) -> (i32, i32) {
    %c0_i32 = arith.constant 0 : i32
    %c0_i32_0 = arith.constant 0 : i32
    %c0_i32_1 = arith.constant 0 : i32
    return %c0_i32, %c0_i32_0 : i32, i32
  }
  func.func @transform_5(%arg0: i32) -> (i32, i32) {
    %c0_i32 = arith.constant 0 : i32
    %c0_i32_0 = arith.constant 0 : i32
    %c0_i32_1 = arith.constant 0 : i32
    return %c0_i32, %c0_i32_0 : i32, i32
  }
  func.func @transform_6(%arg0: i32) -> (i32, i32) {
    %c0_i32 = arith.constant 0 : i32
    %c0_i32_0 = arith.constant 0 : i32
    %c0_i32_1 = arith.constant 0 : i32
    return %c0_i32, %c0_i32_0 : i32, i32
  }
}

</mosaic_0001>

<llo_original>
// kernel: tpu_custom_call.1
$region0: #{tpu_custom_call.1}
  #allocation0 [shape = 'u32[]', space=smem, size = 0x4, offset = 0x4, fixed_abs, tag = 'smem constant byte address 0x4 - core index']
  #allocation1 [shape = 'u32[144,128]{1,0:T(1,128)}', space=vmem, size = 0x12000, scoped, tag = 'internal scratch']
  %s0 = inlined_call_operand.vmem [shape: f32[16,64], index: 0, kind: input, shape index: {}]
  %s1 = inlined_call_operand.vmem [shape: f32[64,32], index: 1, kind: input, shape index: {}]
  %s2 = inlined_call_operand.vmem [shape: f32[1,32], index: 2, kind: input, shape index: {}]
  %s3 = inlined_call_operand.vmem [shape: f32[32,32], index: 3, kind: input, shape index: {}]
  %s4 = inlined_call_operand.vmem [shape: f32[1,32], index: 4, kind: input, shape index: {}]
  %s5 = inlined_call_operand.hbm [shape: f32[16,32], index: 5, kind: output, shape index: {0}]
  %s6 = inlined_call_operand.hbm [shape: f32[16,32], index: 6, kind: output, shape index: {1}]
  %7 = xla_tuple %s5, %s6
  %s8 = sld [smem:[#allocation0]]
  $region38: #{tpu_custom_call.1} parent=0
    _
  %s10 = ssub.s32 1, %s8
  %s11 = scalar_select 0, %s10, %s8
  $region1: #{tpu_custom_call.1} parent=0
    #allocation2 [shape = 'u8[8192]{0}', space=vmem, size = 0x2000, scoped, tag = 'output window, operand 0, single buffered']
    #allocation3 [shape = 's32[1]{0}', space=sflag, size = 0x4, scoped, tag = 'scoped memory for tpu_custom_call.1']
    #allocation4 [shape = 'u8[8192]{0}', space=vmem, size = 0x2000, scoped, tag = 'output window, operand 1, single buffered']
    #allocation5 [shape = 's32[1]{0}', space=sflag, size = 0x4, scoped, tag = 'scoped memory for tpu_custom_call.1']
    %12 = vsyncpa [#allocation3], 0
    %13 = vsyncpa [#allocation5], 0
    // Predicated region
    $region2: #{tpu_custom_call.1} parent=1 // pred_check
      _
    $region3: #{tpu_custom_call.1} parent=1 // pred_check_branch
      %15 = sbr.rel (0) target = $region5
    $region4: #{tpu_custom_call.1} parent=1 // pred_region
      _
    $region5: #{tpu_custom_call.1} parent=1 // pred_fallthru
      _
    // Predicated region
    $region6: #{tpu_custom_call.1} parent=1 // pred_check
      _
    $region7: #{tpu_custom_call.1} parent=1 // pred_check_branch
      %17 = sbr.rel (0) target = $region9
    $region8: #{tpu_custom_call.1} parent=1 // pred_region
      _
    $region9: #{tpu_custom_call.1} parent=1 // pred_fallthru
      _
    // Predicated region
    $region10: #{tpu_custom_call.1} parent=1 // pred_check
      _
    $region11: #{tpu_custom_call.1} parent=1 // pred_check_branch
      %19 = sbr.rel (0) target = $region13
    $region12: #{tpu_custom_call.1} parent=1 // pred_region
      _
    $region13: #{tpu_custom_call.1} parent=1 // pred_fallthru
      _
    // Predicated region
    $region14: #{tpu_custom_call.1} parent=1 // pred_check
      _
    $region15: #{tpu_custom_call.1} parent=1 // pred_check_branch
      %21 = sbr.rel (0) target = $region17
    $region16: #{tpu_custom_call.1} parent=1 // pred_region
      _
    $region17: #{tpu_custom_call.1} parent=1 // pred_fallthru
      _
    // Predicated region
    $region18: #{tpu_custom_call.1} parent=1 // pred_check
      _
    $region19: #{tpu_custom_call.1} parent=1 // pred_check_branch
      %23 = sbr.rel (0) target = $region21
    $region20: #{tpu_custom_call.1} parent=1 // pred_region
      _
    $region21: #{tpu_custom_call.1} parent=1 // pred_fallthru
      _
    %v24 = vld [vmem:[%s0] sm:$0xff]
    %v25 = vld [vmem:[%s0 + $0x8] sm:$0xff]
    %v26 = vmax.f32 %v24, 0.0
    %v27 = vmax.f32 %v25, 0.0
    %v28 = vld [vmem:[%s1] sm:$0xff]
    %v29 = vld [vmem:[%s1 + $0x8] sm:$0xff]
    %v30 = vld [vmem:[%s1 + $0x10] sm:$0xff]
    %v31 = vld [vmem:[%s1 + $0x18] sm:$0xff]
    %v32 = vld [vmem:[%s1 + $0x20] sm:$0xff]
    %v33 = vld [vmem:[%s1 + $0x28] sm:$0xff]
    %v34 = vld [vmem:[%s1 + $0x30] sm:$0xff]
    %v35 = vld [vmem:[%s1 + $0x38] sm:$0xff]
    %v36 = vld [vmem:[%s2] sm:$0x1]
    %v38 = vlaneseq
    %v39 = vshrl.u32 %v38, 7
    %v40 = vsub.s32 0, %v39
    %v41 = vrot.slane %v36, %v40
    %vm43 = vcmask 523264
    %v45 = vsel %vm43, %v26, 0
    %v48 = vsel %vm43, %v27, 0
    %50 = vmatprep.subr.mxu0 0.0
    %51 = vmatpush1.msra.mxu0 0.0
    %52 = vmatprep.subr.mxu0 0.0
    %53 = vmatpush1.msra.mxu0 0.0
    %54 = vmatprep.subr.mxu0 0.0
    %55 = vmatpush1.msra.mxu0 0.0
    %56 = vmatprep.subr.mxu0 0.0
    %57 = vmatpush1.msra.mxu0 0.0
    %58 = vmatprep.subr.mxu0 0.0
    %59 = vmatpush1.msra.mxu0 0.0
    %60 = vmatprep.subr.mxu0 0.0
    %61 = vmatpush1.msra.mxu0 0.0
    %62 = vmatprep.subr.mxu0 0.0
    %63 = vmatpush1.msra.mxu0 0.0
    %64 = vmatprep.subr.mxu0 0.0
    %65 = vmatpush1.msra.mxu0 0.0
    %66 = vmatprep.subr.mxu0 0.0
    %67 = vmatpush1.msra.mxu0 %v35
    %68 = vmatprep.subr.mxu0 0.0
    %69 = vmatpush1.msra.mxu0 %v34
    %70 = vmatprep.subr.mxu0 0.0
    %71 = vmatpush1.msra.mxu0 %v33
    %72 = vmatprep.subr.mxu0 0.0
    %73 = vmatpush1.msra.mxu0 %v32
    %74 = vmatprep.subr.mxu0 0.0
    %75 = vmatpush1.msra.mxu0 %v31
    %76 = vmatprep.subr.mxu0 0.0
    %77 = vmatpush1.msra.mxu0 %v30
    %78 = vmatprep.subr.mxu0 0.0
    %79 = vmatpush1.msra.mxu0 %v29
    %80 = vmatprep.subr.mxu0 0.0
    %81 = vmatpush1.msra.mxu0 %v28
    %82 = vmatprep.subr.mxu0 0.0
    %83 = vmatpush2.msra.mxu0 0.0
    %84 = vmatprep.subr.mxu0 0.0
    %85 = vmatpush2.msra.mxu0 0.0
    %86 = vmatprep.subr.mxu0 0.0
    %87 = vmatpush2.msra.mxu0 0.0
    %88 = vmatprep.subr.mxu0 0.0
    %89 = vmatpush2.msra.mxu0 0.0
    %90 = vmatprep.subr.mxu0 0.0
    %91 = vmatpush2.msra.mxu0 0.0
    %92 = vmatprep.subr.mxu0 0.0
    %93 = vmatpush2.msra.mxu0 0.0
    %94 = vmatprep.subr.mxu0 0.0
    %95 = vmatpush2.msra.mxu0 0.0
    %96 = vmatprep.subr.mxu0 0.0
    %97 = vmatpush2.msra.mxu0 0.0
    %98 = vmatprep.subr.mxu0 0.0
    %99 = vmatpush2.msra.mxu0 0.0
    %100 = vmatprep.subr.mxu0 0.0
    %101 = vmatpush2.msra.mxu0 0.0
    %102 = vmatprep.subr.mxu0 0.0
    %103 = vmatpush2.msra.mxu0 0.0
    %104 = vmatprep.subr.mxu0 0.0
    %105 = vmatpush2.msra.mxu0 0.0
    %106 = vmatprep.subr.mxu0 0.0
    %107 = vmatpush2.msra.mxu0 0.0
    %108 = vmatprep.subr.mxu0 0.0
    %109 = vmatpush2.msra.mxu0 0.0
    %110 = vmatprep.subr.mxu0 0.0
    %111 = vmatpush2.msra.mxu0 0.0
    %112 = vmatprep.subr.mxu0 0.0
    %113 = vmatpush2.msra.mxu0 0.0
    %114 = vmatprep.mubr.f32.mxu0 0.0
    %115 = vmatmul.mubr.f32.gmra.mxu0 %v45
    %v116 = vpop.f32.mrf.mxu0
    %v117 = vadd.f32 %v41, %v116
    %v118 = vpop.f32.mrf.mxu0
    %119 = vmatprep.mubr.f32.mxu0 0.0
    %120 = vmatmul.mubr.f32.gmra.mxu0 %v48
    %v121 = vpop.f32.mrf.mxu0
    %v122 = vadd.f32 %v41, %v121
    %v123 = vpop.f32.mrf.mxu0
    %124 = vdwg.mxu0
    %vm125 = vcmask 261120
    %126 = vst.msk [vmem:[#allocation2] sm:$0xff] %vm125, %v117
    %127 = vst.msk [vmem:[#allocation2 + $0x8] sm:$0xff] %vm125, %v122
    %v128 = vmax.f32 %v117, 0.0
    %v129 = vmax.f32 %v122, 0.0
    %v130 = vld [vmem:[%s3] sm:$0xff]
    %v131 = vld [vmem:[%s3 + $0x8] sm:$0xff]
    %v132 = vld [vmem:[%s3 + $0x10] sm:$0xff]
    %v133 = vld [vmem:[%s3 + $0x18] sm:$0xff]
    %v134 = vld [vmem:[%s4] sm:$0x1]
    %v136 = vlaneseq
    %v137 = vshrl.u32 %v136, 7
    %v138 = vsub.s32 0, %v137
    %v139 = vrot.slane %v134, %v138
    %v142 = vsel %vm125, %v128, 0
    %v145 = vsel %vm125, %v129, 0
    %147 = vmatprep.subr.mxu0 0.0
    %148 = vmatpush1.msra.mxu0 0.0
    %149 = vmatprep.subr.mxu0 0.0
    %150 = vmatpush1.msra.mxu0 0.0
    %151 = vmatprep.subr.mxu0 0.0
    %152 = vmatpush1.msra.mxu0 0.0
    %153 = vmatprep.subr.mxu0 0.0
    %154 = vmatpush1.msra.mxu0 0.0
    %155 = vmatprep.subr.mxu0 0.0
    %156 = vmatpush1.msra.mxu0 0.0
    %157 = vmatprep.subr.mxu0 0.0
    %158 = vmatpush1.msra.mxu0 0.0
    %159 = vmatprep.subr.mxu0 0.0
    %160 = vmatpush1.msra.mxu0 0.0
    %161 = vmatprep.subr.mxu0 0.0
    %162 = vmatpush1.msra.mxu0 0.0
    %163 = vmatprep.subr.mxu0 0.0
    %164 = vmatpush1.msra.mxu0 0.0
    %165 = vmatprep.subr.mxu0 0.0
    %166 = vmatpush1.msra.mxu0 0.0
    %167 = vmatprep.subr.mxu0 0.0
    %168 = vmatpush1.msra.mxu0 0.0
    %169 = vmatprep.subr.mxu0 0.0
    %170 = vmatpush1.msra.mxu0 0.0
    %171 = vmatprep.subr.mxu0 0.0
    %172 = vmatpush1.msra.mxu0 %v133
    %173 = vmatprep.subr.mxu0 0.0
    %174 = vmatpush1.msra.mxu0 %v132
    %175 = vmatprep.subr.mxu0 0.0
    %176 = vmatpush1.msra.mxu0 %v131
    %177 = vmatprep.subr.mxu0 0.0
    %178 = vmatpush1.msra.mxu0 %v130
    %179 = vmatprep.subr.mxu0 0.0
    %180 = vmatpush2.msra.mxu0 0.0
    %181 = vmatprep.subr.mxu0 0.0
    %182 = vmatpush2.msra.mxu0 0.0
    %183 = vmatprep.subr.mxu0 0.0
    %184 = vmatpush2.msra.mxu0 0.0
    %185 = vmatprep.subr.mxu0 0.0
    %186 = vmatpush2.msra.mxu0 0.0
    %187 = vmatprep.subr.mxu0 0.0
    %188 = vmatpush2.msra.mxu0 0.0
    %189 = vmatprep.subr.mxu0 0.0
    %190 = vmatpush2.msra.mxu0 0.0
    %191 = vmatprep.subr.mxu0 0.0
    %192 = vmatpush2.msra.mxu0 0.0
    %193 = vmatprep.subr.mxu0 0.0
    %194 = vmatpush2.msra.mxu0 0.0
    %195 = vmatprep.subr.mxu0 0.0
    %196 = vmatpush2.msra.mxu0 0.0
    %197 = vmatprep.subr.mxu0 0.0
    %198 = vmatpush2.msra.mxu0 0.0
    %199 = vmatprep.subr.mxu0 0.0
    %200 = vmatpush2.msra.mxu0 0.0
    %201 = vmatprep.subr.mxu0 0.0
    %202 = vmatpush2.msra.mxu0 0.0
    %203 = vmatprep.subr.mxu0 0.0
    %204 = vmatpush2.msra.mxu0 0.0
    %205 = vmatprep.subr.mxu0 0.0
    %206 = vmatpush2.msra.mxu0 0.0
    %207 = vmatprep.subr.mxu0 0.0
    %208 = vmatpush2.msra.mxu0 0.0
    %209 = vmatprep.subr.mxu0 0.0
    %210 = vmatpush2.msra.mxu0 0.0
    %211 = vmatprep.mubr.f32.mxu0 0.0
    %212 = vmatmul.mubr.f32.gmra.mxu0 %v142
    %v213 = vpop.f32.mrf.mxu0
    %v214 = vadd.f32 %v139, %v213
    %v215 = vpop.f32.mrf.mxu0
    %216 = vmatprep.mubr.f32.mxu0 0.0
    %217 = vmatmul.mubr.f32.gmra.mxu0 %v145
    %v218 = vpop.f32.mrf.mxu0
    %v219 = vadd.f32 %v139, %v218
    %v220 = vpop.f32.mrf.mxu0
    %221 = vdwg.mxu0
    %222 = vst.msk [vmem:[#allocation4] sm:$0xff] %vm125, %v214
    %223 = vst.msk [vmem:[#allocation4 + $0x8] sm:$0xff] %vm125, %v219
    // Predicated region
    $region22: #{tpu_custom_call.1} parent=1 // pred_check
      _
    $region23: #{tpu_custom_call.1} parent=1 // pred_check_branch
      %225 = sbr.rel (0) target = $region25
    $region24: #{tpu_custom_call.1} parent=1 // pred_region
      %s227 = ssub.s32 256, 256
      %228 = vsyncadd [#allocation3], %s227
      %s229 = sshll.u32 [#allocation2], 4
      %s230 = int_to_ptr.vmem [resolvable:$true] %s229
      %235 = dma.vmem_to_hbm [thread:$0]  %s230, 256, %s5, [#allocation3], 128, 128, 8
    $region25: #{tpu_custom_call.1} parent=1 // pred_fallthru
      _
    // Predicated region
    $region26: #{tpu_custom_call.1} parent=1 // pred_check
      _
    $region27: #{tpu_custom_call.1} parent=1 // pred_check_branch
      %237 = sbr.rel (0) target = $region29
    $region28: #{tpu_custom_call.1} parent=1 // pred_region
      %s239 = ssub.s32 256, 256
      %240 = vsyncadd [#allocation5], %s239
      %s241 = sshll.u32 [#allocation4], 4
      %s242 = int_to_ptr.vmem [resolvable:$true] %s241
      %247 = dma.vmem_to_hbm [thread:$0]  %s242, 256, %s6, [#allocation5], 128, 128, 8
    $region29: #{tpu_custom_call.1} parent=1 // pred_fallthru
      _
    // Predicated region
    $region30: #{tpu_custom_call.1} parent=1 // pred_check
      _
    $region31: #{tpu_custom_call.1} parent=1 // pred_check_branch
      %249 = sbr.rel (0) target = $region33
    $region32: #{tpu_custom_call.1} parent=1 // pred_region
      %250 = dma.done [#allocation3], 256
    $region33: #{tpu_custom_call.1} parent=1 // pred_fallthru
      _
    // Predicated region
    $region34: #{tpu_custom_call.1} parent=1 // pred_check
      _
    $region35: #{tpu_custom_call.1} parent=1 // pred_check_branch
      %252 = sbr.rel (0) target = $region37
    $region36: #{tpu_custom_call.1} parent=1 // pred_region
      %253 = dma.done [#allocation5], 256
    $region37: #{tpu_custom_call.1} parent=1 // pred_fallthru
      _
    %254 = vsyncpa [#allocation3], 1
    %255 = vsyncpa [#allocation5], 1

</llo_original>
